<compile_context>
chip_gen: v7x
topology: tpu7x:2x2x1
jax: 0.10.0
libtpu: 0.0.40
codegen_flags: <defaults>
</compile_context>

<pallas_src>
import math

import jax
import jax.numpy as jnp
from jax.experimental import pallas as pl
from jax.experimental.pallas import tpu as pltpu


def _round_up(x, m):
    return ((x + m - 1) // m) * m


def _k_tiling(K, num_splits, max_tile_k):
    """K tiling shared by init-time weight padding and the forward wrapper.

    Returns (K_pad, tile_k, num_k) with K_pad = num_splits * num_k * tile_k and
    tile_k a multiple of 128 (lane width). Idempotent: feeding K_pad back in
    returns the same tiling, so the weight is padded exactly once (at init).
    """
    K_pad = _round_up(K, num_splits * 128)
    k_split = K_pad // num_splits
    if k_split <= max_tile_k:
        tile_k = k_split
    else:
        tile_k = max_tile_k                        # multiple of 128
        k_split = _round_up(k_split, tile_k)
        K_pad = num_splits * k_split
    return K_pad, tile_k, k_split // tile_k


def _fc_kernel(feat_ref, w_ref, b_ref, out_ref):
    """One (split, K-tile) step of out = feat @ W + b, accumulating in out_ref."""
    c = pl.program_id(0)   # K-range split (sharded across TCs on v7x)
    k = pl.program_id(1)   # K tiles within a split (reduction axis)

    # bf16 cast fused into the kernel (VPU work hidden under the weight DMA);
    # f32 accumulation on the MXU via preferred_element_type.
    partial = jnp.dot(
        feat_ref[...].astype(jnp.bfloat16),
        w_ref[...],
        preferred_element_type=jnp.float32,
    )

    @pl.when(k == 0)
    def _init():
        out_ref[...] = partial

    @pl.when(k > 0)
    def _accumulate():
        out_ref[...] += partial

    # Fold the bias into the first step of split 0 only, so the wrapper-side
    # partial sum over splits stays correct.
    @pl.when((k == 0) & (c == 0))
    def _bias():
        out_ref[...] += b_ref[...]


def fc_pallas(features, weight_kn, bias, *, num_splits=2, max_tile_k=32768):
    """Linear layer: features [B, K] @ weight_kn [K(_pad), N] + bias [N] -> [B, N] f32.

    weight_kn is expected bf16 and (optionally) already K-padded at init; the
    wrapper pads only the tiny feature row per call. N stays unpadded.
    """
    B, K = features.shape
    K_w, N = weight_kn.shape

    K_pad, tile_k, num_k = _k_tiling(K_w, num_splits, max_tile_k)

    if weight_kn.dtype != jnp.bfloat16:
        weight_kn = weight_kn.astype(jnp.bfloat16)
    if K_pad != K_w:      # no-op when the weight was padded once at init
        weight_kn = jnp.pad(weight_kn, ((0, K_pad - K_w), (0, 0)))
    if K_pad != K:        # features only: B x pad, tiny
        features = jnp.pad(features, ((0, 0), (0, K_pad - K)))

    bias2d = bias.reshape(1, N).astype(jnp.float32)

    # VMEM budget from actual (layout-padded) tile sizes, double-buffered,
    # plus slack; floored at the usual scoped default, capped for v7x (64 MiB).
    feat_tile = _round_up(B, 8) * tile_k * 4                 # f32 feature tile
    w_tile = tile_k * _round_up(N, 128) * 2                  # bf16, lane-padded in VMEM
    out_tile = _round_up(B, 8) * _round_up(N, 128) * 4       # f32 resident output block
    bias_tile = 8 * _round_up(N, 128) * 4
    vmem_limit = 2 * (feat_tile + w_tile + out_tile + bias_tile) + (2 << 20)
    vmem_limit = min(max(vmem_limit, 16 << 20), 64 << 20)

    out_partials = pl.pallas_call(
        _fc_kernel,
        out_shape=jax.ShapeDtypeStruct((num_splits, B, N), jnp.float32),
        grid_spec=pltpu.PrefetchScalarGridSpec(
            num_scalar_prefetch=0,
            grid=(num_splits, num_k),
            in_specs=[
                # features: each split c owns the contiguous K range
                # [c*num_k*tile_k, (c+1)*num_k*tile_k).
                pl.BlockSpec((B, tile_k), lambda c, k: (0, c * num_k + k)),
                # weight: same K tiling, full (unpadded) N per block.
                pl.BlockSpec((tile_k, N), lambda c, k: (c * num_k + k, 0)),
                # bias: single resident block.
                pl.BlockSpec((1, N), lambda c, k: (0, 0)),
            ],
            # One partial [B, N] slab per split; constant block index across the
            # inner K axis -> VMEM-resident accumulator.
            out_specs=pl.BlockSpec((None, B, N), lambda c, k: (c, 0, 0)),
        ),
        compiler_params=pltpu.CompilerParams(
            dimension_semantics=("parallel", "arbitrary"),
            vmem_limit_bytes=vmem_limit,
        ),
    )(features, weight_kn, bias2d)

    # Tiny (num_splits, B, N) reduction; bias already folded into split 0.
    return out_partials.sum(axis=0)


class ClassificationTaskPallas:
    """JAX/Pallas equivalent of the PyTorch ClassificationTask module."""

    def __init__(self, n_classes, dim_feature, key, *, num_splits=2,
                 max_tile_k=32768):
        self.n_classes = n_classes
        self.dim_feature = dim_feature
        self.num_splits = num_splits
        self.max_tile_k = max_tile_k

        # nn.init.kaiming_uniform_ (defaults a=0, fan_in, leaky_relu):
        #   bound = sqrt(2) * sqrt(3 / fan_in) = sqrt(6 / fan_in)
        bound = math.sqrt(6.0 / dim_feature)
        w_nk = jax.random.uniform(
            key, (n_classes, dim_feature), jnp.float32, minval=-bound, maxval=bound
        )
        # Store transposed [K, N] in bf16 (MXU feed dtype, halves weight HBM
        # bytes) and K-pad ONCE here — the weight is frozen.
        w_kn = jnp.transpose(w_nk).astype(jnp.bfloat16)
        K_pad, _, _ = _k_tiling(dim_feature, num_splits, max_tile_k)
        if K_pad != dim_feature:
            w_kn = jnp.pad(w_kn, ((0, K_pad - dim_feature), (0, 0)))
        self.weight_kn = w_kn
        # nn.init.constant_(bias, 0)
        self.bias = jnp.zeros((n_classes,), jnp.float32)

    def model(self, x):
        # TODO(synk): opaque frozen backbone; stubbed as flatten -> [B, dim_feature]
        B = x.shape[0]
        return x.reshape(B, -1).astype(jnp.float32)

    def forward(self, x, return_features=False):
        features = self.model(x)
        out = fc_pallas(
            features, self.weight_kn, self.bias,
            num_splits=self.num_splits, max_tile_k=self.max_tile_k,
        )
        if return_features:
            return out, features
        return out


if __name__ == "__main__":
    key = jax.random.PRNGKey(0)
    kx, kw = jax.random.split(key)

    # Small shapes consistent with the module's forward:
    # x is an image batch (NCHW); features = C*H*W = 4*16*16 = 1024 (stand-in
    # for dim_feature=49152); n_classes = 16.
    B, C, H, W = 2, 4, 16, 16
    n_classes = 16
    dim_feature = C * H * W

    x = jax.random.normal(kx, (B, C, H, W), jnp.float32)

    task = ClassificationTaskPallas(n_classes, dim_feature, kw)
    out = task.forward(x)
    out = jax.block_until_ready(out)

    # Sanity check against plain-JAX reference (bf16-stored weight; the kernel
    # also casts features to bf16 for the MXU, so use a bf16 tolerance).
    feat_ref = x.reshape(B, -1)
    w_ref = task.weight_kn[:dim_feature].astype(jnp.float32)
    ref = feat_ref @ w_ref + task.bias
    assert out.shape == (B, n_classes)
    assert out.dtype == jnp.float32
    assert jnp.allclose(out, ref, atol=2e-2, rtol=2e-2)

    print("KERNEL_OK")
</pallas_src>

<mosaic_0001>
module attributes {stable_mosaic.version = 11 : i64} {
  func.func @_fc_kernel(%arg0: i32, %arg1: i32, %arg2: memref<2x512xf32, #tpu.memory_space<vmem>>, %arg3: memref<512x16xbf16, #tpu.memory_space<vmem>>, %arg4: memref<1x16xf32, #tpu.memory_space<vmem>>, %arg5: memref<1x2x16xf32, #tpu.memory_space<vmem>>) attributes {dimension_semantics = [#tpu.dimension_semantics<parallel>, #tpu.dimension_semantics<arbitrary>], iteration_bounds = array<i64: 2, 1>, scalar_prefetch = 0 : i64, scratch_operands = 0 : i64, tpu.core_type = #tpu.core_type<tc>, window_params = [{transform_indices = @transform_0, window_bounds = array<i64: 2, 512>}, {transform_indices = @transform_1, window_bounds = array<i64: 512, 16>}, {pipeline_mode = #tpu.pipeline_mode<synchronous>, transform_indices = @transform_2, window_bounds = array<i64: 1, 16>}, {transform_indices = @transform_3, window_bounds = array<i64: 1, 2, 16>}]} {
    %c0 = arith.constant 0 : index
    %c0_0 = arith.constant 0 : index
    %0 = vector.load %arg2[%c0, %c0_0] : memref<2x512xf32, #tpu.memory_space<vmem>>, vector<2x512xf32>
    %1 = arith.truncf %0 : vector<2x512xf32> to vector<2x512xbf16>
    %c0_1 = arith.constant 0 : index
    %c0_2 = arith.constant 0 : index
    %2 = vector.load %arg3[%c0_1, %c0_2] : memref<512x16xbf16, #tpu.memory_space<vmem>>, vector<512x16xbf16>
    %cst = arith.constant dense<0.000000e+00> : vector<2x16xf32>
    %3 = tpu.matmul %1, %2, %cst {dimension_numbers = #tpu.dot_dimension_numbers<[1], [0], [0], [1], [0, 0, 1, 1], [], []>} : vector<2x512xbf16>, vector<512x16xbf16>, vector<2x16xf32> -> vector<2x16xf32>
    %c0_i32 = arith.constant 0 : i32
    %4 = arith.cmpi eq, %arg1, %c0_i32 : i32
    %5 = arith.extui %4 : i1 to i32
    %c0_i32_3 = arith.constant 0 : i32
    %6 = arith.cmpi ne, %5, %c0_i32_3 : i32
    scf.if %6 {
      %c0_9 = arith.constant 0 : index
      %c0_10 = arith.constant 0 : index
      %c0_11 = arith.constant 0 : index
      %15 = vector.load %arg5[%c0_9, %c0_10, %c0_11] : memref<1x2x16xf32, #tpu.memory_space<vmem>>, vector<1x2x16xf32>
      %16 = vector.shape_cast %15 : vector<1x2x16xf32> to vector<2x16xf32>
      %17 = vector.shape_cast %3 : vector<2x16xf32> to vector<1x2x16xf32>
      tpu.vector_store %arg5[%c0_9, %c0_10, %c0_11], %17 {strides = array<i32>} : memref<1x2x16xf32, #tpu.memory_space<vmem>>, vector<1x2x16xf32>,
    } else {
    }
    %c0_i32_4 = arith.constant 0 : i32
    %7 = arith.cmpi sgt, %arg1, %c0_i32_4 : i32
    %8 = arith.extui %7 : i1 to i32
    %c0_i32_5 = arith.constant 0 : i32
    %9 = arith.cmpi ne, %8, %c0_i32_5 : i32
    scf.if %9 {
      %c0_9 = arith.constant 0 : index
      %c0_10 = arith.constant 0 : index
      %c0_11 = arith.constant 0 : index
      %15 = vector.load %arg5[%c0_9, %c0_10, %c0_11] : memref<1x2x16xf32, #tpu.memory_space<vmem>>, vector<1x2x16xf32>
      %16 = vector.shape_cast %15 : vector<1x2x16xf32> to vector<2x16xf32>
      %17 = arith.addf %16, %3 : vector<2x16xf32>
      %c0_12 = arith.constant 0 : index
      %c0_13 = arith.constant 0 : index
      %c0_14 = arith.constant 0 : index
      %18 = vector.load %arg5[%c0_12, %c0_13, %c0_14] : memref<1x2x16xf32, #tpu.memory_space<vmem>>, vector<1x2x16xf32>
      %19 = vector.shape_cast %18 : vector<1x2x16xf32> to vector<2x16xf32>
      %20 = vector.shape_cast %17 : vector<2x16xf32> to vector<1x2x16xf32>
      tpu.vector_store %arg5[%c0_12, %c0_13, %c0_14], %20 {strides = array<i32>} : memref<1x2x16xf32, #tpu.memory_space<vmem>>, vector<1x2x16xf32>,
    } else {
    }
    %c0_i32_6 = arith.constant 0 : i32
    %10 = arith.cmpi eq, %arg1, %c0_i32_6 : i32
    %c0_i32_7 = arith.constant 0 : i32
    %11 = arith.cmpi eq, %arg0, %c0_i32_7 : i32
    %12 = arith.andi %10, %11 : i1
    %13 = arith.extui %12 : i1 to i32
    %c0_i32_8 = arith.constant 0 : i32
    %14 = arith.cmpi ne, %13, %c0_i32_8 : i32
    scf.if %14 {
      %c0_9 = arith.constant 0 : index
      %c0_10 = arith.constant 0 : index
      %c0_11 = arith.constant 0 : index
      %15 = vector.load %arg5[%c0_9, %c0_10, %c0_11] : memref<1x2x16xf32, #tpu.memory_space<vmem>>, vector<1x2x16xf32>
      %16 = vector.shape_cast %15 : vector<1x2x16xf32> to vector<2x16xf32>
      %c0_12 = arith.constant 0 : index
      %c0_13 = arith.constant 0 : index
      %17 = vector.load %arg4[%c0_12, %c0_13] : memref<1x16xf32, #tpu.memory_space<vmem>>, vector<1x16xf32>
      %18 = vector.broadcast %17 : vector<1x16xf32> to vector<2x16xf32>
      %19 = arith.addf %16, %18 : vector<2x16xf32>
      %c0_14 = arith.constant 0 : index
      %c0_15 = arith.constant 0 : index
      %c0_16 = arith.constant 0 : index
      %20 = vector.load %arg5[%c0_14, %c0_15, %c0_16] : memref<1x2x16xf32, #tpu.memory_space<vmem>>, vector<1x2x16xf32>
      %21 = vector.shape_cast %20 : vector<1x2x16xf32> to vector<2x16xf32>
      %22 = vector.shape_cast %19 : vector<2x16xf32> to vector<1x2x16xf32>
      tpu.vector_store %arg5[%c0_14, %c0_15, %c0_16], %22 {strides = array<i32>} : memref<1x2x16xf32, #tpu.memory_space<vmem>>, vector<1x2x16xf32>,
    } else {
    }
    return
  }
  func.func @transform_0(%arg0: i32, %arg1: i32) -> (i32, i32) {
    %c1_i32 = arith.constant 1 : i32
    %0 = arith.muli %arg0, %c1_i32 : i32
    %1 = arith.addi %0, %arg1 : i32
    %c0_i32 = arith.constant 0 : i32
    %c0_i32_0 = arith.constant 0 : i32
    return %c0_i32, %1 : i32, i32
  }
  func.func @transform_1(%arg0: i32, %arg1: i32) -> (i32, i32) {
    %c1_i32 = arith.constant 1 : i32
    %0 = arith.muli %arg0, %c1_i32 : i32
    %1 = arith.addi %0, %arg1 : i32
    %c0_i32 = arith.constant 0 : i32
    %c0_i32_0 = arith.constant 0 : i32
    return %1, %c0_i32 : i32, i32
  }
  func.func @transform_2(%arg0: i32, %arg1: i32) -> (i32, i32) {
    %c0_i32 = arith.constant 0 : i32
    %c0_i32_0 = arith.constant 0 : i32
    %c0_i32_1 = arith.constant 0 : i32
    return %c0_i32, %c0_i32_0 : i32, i32
  }
  func.func @transform_3(%arg0: i32, %arg1: i32) -> (i32, i32, i32) {
    %c0_i32 = arith.constant 0 : i32
    %c0_i32_0 = arith.constant 0 : i32
    %c0_i32_1 = arith.constant 0 : i32
    return %arg0, %c0_i32, %c0_i32_0 : i32, i32, i32
  }
}

</mosaic_0001>

<llo_original>
// kernel: tpu_custom_call.1
$region0: #{tpu_custom_call.1}
  #allocation0 [shape = 'u32[]', space=smem, size = 0x4, offset = 0x4, fixed_abs, tag = 'smem constant byte address 0x4 - core index']
  #allocation1 [shape = 'u32[144,128]{1,0:T(1,128)}', space=vmem, size = 0x12000, scoped, tag = 'internal scratch']
  %s0 = inlined_call_operand.vmem [shape: f32[2,1024], index: 0, kind: input, shape index: {}]
  %s1 = inlined_call_operand.vmem [shape: bf16[1024,16], index: 1, kind: input, shape index: {}]
  %s2 = inlined_call_operand.vmem [shape: f32[1,16], index: 2, kind: input, shape index: {}]
  %s3 = inlined_call_operand.hbm [shape: f32[2,2,16], index: 3, kind: output, shape index: {}]
  %s4 = sld [smem:[#allocation0]]
  $region57: #{tpu_custom_call.1} parent=0
    _
  %s6 = ssub.s32 1, %s4
  %s7 = scalar_select 0, %s6, %s4
  $region1: #{tpu_custom_call.1} parent=0
    #allocation2 [shape = 'u8[2048]{0}', space=vmem, size = 0x800, scoped, tag = 'output window, operand 0']
    #allocation3 [shape = 's32[2]{0}', space=sflag, size = 0x8, scoped, tag = 'scoped memory for tpu_custom_call.1']
    %8 = vsyncpa [#allocation3], 0
    %s9 = scalar_lea.sflag [#allocation3], 1
    %10 = vsyncpa %s9, 0
    loop: start=0, step=1, limit=4
    $region2: #{tpu_custom_call.1} parent=1 // loop_pre_header
      _
    $region3: #{tpu_custom_call.1} parent=1 // loop_header
      %s12 = sphi 0, %s16
      %p13 = scmp.ge.s32.totalorder %s12, 4
      %s19 = sphi 0, %s31
      %s20 = sphi 0, %s27
      %s21 = sphi 0, %s19
      %s22 = sphi 0, %s20
      %s23 = sphi 0, %s21
      %s24 = sphi 0, %s22
      %s36 = sphi 0, %s38
      %s39 = sphi 0, %s36
      %s40 = sphi 0, %s39
      %s56 = sphi 0, %s40
      %s64 = sphi 0, %s66
      %s67 = sphi 0, %s64
      %s68 = sphi 0, %s67
      %s84 = sphi 0, %s68
      %s88 = sphi 0, %s88
      %s90 = sphi 0, %s88
      %s91 = sphi 0, %s90
      %s105 = sphi 0, %s91
      %s111 = sphi 0, %s113
      %s114 = sphi 0, %s111
      %s115 = sphi 0, %s114
      %s131 = sphi 0, %s115
    $region4: #{tpu_custom_call.1} parent=1 // loop_header_branch
      %15 = sbr.rel (%p13) target = $region8
    $region5: #{tpu_custom_call.1} parent=1 // loop_body
      %s17 = ssub.s32 %s12, 1
      %s18 = ssub.s32 %s12, 2
      %s25 = sadd.s32 1, %s20
      %p26 = scmp.ge.s32.totalorder %s25, 1
      %s27 = scalar_select %p26, 0, %s25
      %s28 = sadd.s32 1, %s19
      %s29 = scalar_select %p26, %s28, %s19
      %p30 = scmp.ge.s32.totalorder %s29, 2
      %s31 = scalar_select %p30, 0, %s29
      %s32 = sadd.s32 %s19, %s20
      %s33 = sadd.s32 %s31, %s27
      %s34 = ssub.s32 %s32, %s33
      %p35 = scmp.eq.s32.totalorder %s34, 0
      %s37 = sadd.s32 %s36, 1
      %s38 = scalar_select %p35, %s36, %s37
      %p41 = pneg %p35
      %p42 = scmp.eq.s32.totalorder %s12, 1
      %p43 = por %p41, %p42
      %p44 = scmp.ne.s32.totalorder %s36, %s39
      %p45 = scmp.eq.s32.totalorder %s12, 0
      %p46 = por %p44, %p45
      %p47 = scmp.ne.s32.totalorder %s36, %s39
      %p48 = scmp.eq.s32.totalorder %s17, 1
      %p49 = por %p47, %p48
      %p50 = scmp.ne.s32.totalorder %s39, %s40
      %p51 = scmp.eq.s32.totalorder %s17, 0
      %p52 = por %p50, %p51
      %p53 = scmp.ne.s32.totalorder %s39, %s40
      %p54 = scmp.eq.s32.totalorder %s18, 1
      %p55 = por %p53, %p54
      %p57 = scmp.ne.s32.totalorder %s40, %s56
      %p58 = scmp.eq.s32.totalorder %s18, 0
      %p59 = por %p57, %p58
      %s60 = sadd.s32 %s19, %s20
      %s61 = sadd.s32 %s31, %s27
      %s62 = ssub.s32 %s60, %s61
      %p63 = scmp.eq.s32.totalorder %s62, 0
      %s65 = sadd.s32 %s64, 1
      %s66 = scalar_select %p63, %s64, %s65
      %p69 = pneg %p63
      %p70 = scmp.eq.s32.totalorder %s12, 1
      %p71 = por %p69, %p70
      %p72 = scmp.ne.s32.totalorder %s64, %s67
      %p73 = scmp.eq.s32.totalorder %s12, 0
      %p74 = por %p72, %p73
      %p75 = scmp.ne.s32.totalorder %s64, %s67
      %p76 = scmp.eq.s32.totalorder %s17, 1
      %p77 = por %p75, %p76
      %p78 = scmp.ne.s32.totalorder %s67, %s68
      %p79 = scmp.eq.s32.totalorder %s17, 0
      %p80 = por %p78, %p79
      %p81 = scmp.ne.s32.totalorder %s67, %s68
      %p82 = scmp.eq.s32.totalorder %s18, 1
      %p83 = por %p81, %p82
      %p85 = scmp.ne.s32.totalorder %s68, %s84
      %p86 = scmp.eq.s32.totalorder %s18, 0
      %p87 = por %p85, %p86
      %s89 = sadd.s32 %s88, 1
      %p92 = scmp.eq.s32.totalorder %s12, 1
      %p93 = scmp.ne.s32.totalorder %s88, %s90
      %p94 = scmp.eq.s32.totalorder %s12, 0
      %p95 = por %p93, %p94
      %p96 = scmp.ne.s32.totalorder %s88, %s90
      %p97 = scmp.eq.s32.totalorder %s17, 1
      %p98 = por %p96, %p97
      %p99 = scmp.ne.s32.totalorder %s90, %s91
      %p100 = scmp.eq.s32.totalorder %s17, 0
      %p101 = por %p99, %p100
      %p102 = scmp.ne.s32.totalorder %s90, %s91
      %p103 = scmp.eq.s32.totalorder %s18, 1
      %p104 = por %p102, %p103
      %p106 = scmp.ne.s32.totalorder %s91, %s105
      %p107 = scmp.eq.s32.totalorder %s18, 0
      %p108 = por %p106, %p107
      %s109 = ssub.s32 %s19, %s31
      %p110 = scmp.eq.s32.totalorder %s109, 0
      %s112 = sadd.s32 %s111, 1
      %s113 = scalar_select %p110, %s111, %s112
      %p116 = pneg %p110
      %p117 = scmp.eq.s32.totalorder %s12, 1
      %p118 = por %p116, %p117
      %p119 = scmp.ne.s32.totalorder %s111, %s114
      %p120 = scmp.eq.s32.totalorder %s12, 0
      %p121 = por %p119, %p120
      %p122 = scmp.ne.s32.totalorder %s111, %s114
      %p123 = scmp.eq.s32.totalorder %s17, 1
      %p124 = por %p122, %p123
      %p125 = scmp.ne.s32.totalorder %s114, %s115
      %p126 = scmp.eq.s32.totalorder %s17, 0
      %p127 = por %p125, %p126
      %p128 = scmp.ne.s32.totalorder %s114, %s115
      %p129 = scmp.eq.s32.totalorder %s18, 1
      %p130 = por %p128, %p129
      %p132 = scmp.ne.s32.totalorder %s115, %s131
      %p133 = scmp.eq.s32.totalorder %s18, 0
      %p134 = por %p132, %p133
      %p135 = scmp.le.s32.totalorder 1, %s12
      %p136 = scmp.lt.s32.totalorder %s12, 3
      %p137 = pnand %p135, %p136
      %p138 = pneg %p137
      // Predicated region
      $region9: #{tpu_custom_call.1} parent=5 // pred_check
        _
      $region10: #{tpu_custom_call.1} parent=5 // pred_check_branch
        %140 = sbr.rel (%p137) target = $region12
      $region11: #{tpu_custom_call.1} parent=5 // pred_region
        %s141 = ssub.s32 %s12, 1
        // Predicated region
        $region13: #{tpu_custom_call.1} parent=11 // pred_check
          %p142 = pneg %p101
        $region14: #{tpu_custom_call.1} parent=11 // pred_check_branch
          %144 = sbr.rel (%p142) target = $region16
        $region15: #{tpu_custom_call.1} parent=11 // pred_region
          _
        $region16: #{tpu_custom_call.1} parent=11 // pred_fallthru
          _
      $region12: #{tpu_custom_call.1} parent=5 // pred_fallthru
        _
      %p145 = scmp.lt.s32.totalorder %s12, 2
      // Predicated region
      $region17: #{tpu_custom_call.1} parent=5 // pred_check
        %p146 = pneg %p145
      $region18: #{tpu_custom_call.1} parent=5 // pred_check_branch
        %148 = sbr.rel (%p146) target = $region20
      $region19: #{tpu_custom_call.1} parent=5 // pred_region
        // Predicated region
        $region21: #{tpu_custom_call.1} parent=19 // pred_check
          %p149 = pneg %p46
        $region22: #{tpu_custom_call.1} parent=19 // pred_check_branch
          %151 = sbr.rel (%p149) target = $region24
        $region23: #{tpu_custom_call.1} parent=19 // pred_region
          %s152 = sadd.s32 %s19, %s20
          %s153 = smul.u32 4, %s152
          %p154 = scmp.lt.s32.totalorder %s153, 7
          %s155 = scalar_select %p154, %s153, 7
          %s156 = smul.addr %s155, 2
          %s157 = scalar_lea.vmem %s0, %s156
          %s158 = sadd.s32 %s19, %s20
          %s159 = smul.u32 4, %s158
        $region24: #{tpu_custom_call.1} parent=19 // pred_fallthru
          _
        // Predicated region
        $region25: #{tpu_custom_call.1} parent=19 // pred_check
          %p160 = pneg %p74
        $region26: #{tpu_custom_call.1} parent=19 // pred_check_branch
          %162 = sbr.rel (%p160) target = $region28
        $region27: #{tpu_custom_call.1} parent=19 // pred_region
          %s163 = sadd.s32 %s19, %s20
          %s164 = smul.u32 64, %s163
          %p165 = scmp.lt.s32.totalorder %s164, 127
          %s166 = scalar_select %p165, %s164, 127
          %s167 = smul.addr %s166, 4
          %s168 = scalar_lea.vmem %s1, %s167
          %s169 = sadd.s32 %s19, %s20
          %s170 = smul.u32 64, %s169
        $region28: #{tpu_custom_call.1} parent=19 // pred_fallthru
          _
      $region20: #{tpu_custom_call.1} parent=5 // pred_fallthru
        _
      %p171 = scmp.le.s32.totalorder 1, %s12
      %p172 = scmp.lt.s32.totalorder %s12, 3
      %p173 = pnand %p171, %p172
      %p174 = pneg %p173
      // Predicated region
      $region29: #{tpu_custom_call.1} parent=5 // pred_check
        _
      $region30: #{tpu_custom_call.1} parent=5 // pred_check_branch
        %176 = sbr.rel (%p173) target = $region32
      $region31: #{tpu_custom_call.1} parent=5 // pred_region
        %s177 = ssub.s32 %s12, 1
        %s178 = sadd.s32 %s21, %s22
        %s179 = smul.u32 4, %s178
        %p180 = scmp.lt.s32.totalorder %s179, 7
        %s181 = scalar_select %p180, %s179, 7
        %s182 = smul.addr %s181, 2
        %s183 = scalar_lea.vmem %s0, %s182
        %p184 = pneg %p52
        %p185 = pneg %p49
        %s186 = sadd.s32 %s21, %s22
        %s187 = smul.u32 64, %s186
        %p188 = scmp.lt.s32.totalorder %s187, 127
        %s189 = scalar_select %p188, %s187, 127
        %s190 = smul.addr %s189, 4
        %s191 = scalar_lea.vmem %s1, %s190
        %p192 = pneg %p80
        %p193 = pneg %p77
        %p194 = pneg %p101
        %p195 = pneg %p98
        %p196 = pneg %p127
        %p197 = pneg %p124
        %s198 = sand.u32 %s114, 1
        %s199 = scalar_lea.sflag [#allocation3], %s198
        %s200 = sand.u32 %s114, 1
        %s201 = smul.addr %s200, 2
        %s202 = scalar_lea.vmem [#allocation2], %s201
        %s203 = sadd.s32 %s21, %s22
        %s204 = smul.u32 4, %s203
        %p205 = scmp.lt.s32.totalorder %s204, 7
        %s206 = scalar_select %p205, %s204, 7
        %s207 = smul.addr %s206, 2
        %s208 = scalar_lea.vmem %s0, %s207
        %s209 = sadd.s32 %s21, %s22
        %s210 = smul.u32 4, %s209
        %s211 = sadd.s32 %s21, %s22
        %s212 = smul.u32 64, %s211
        %p213 = scmp.lt.s32.totalorder %s212, 127
        %s214 = scalar_select %p213, %s212, 127
        %s215 = smul.addr %s214, 4
        %s216 = scalar_lea.vmem %s1, %s215
        %s217 = sadd.s32 %s21, %s22
        %s218 = smul.u32 64, %s217
        %v220 = vld [vmem:[%s208] sm:$0xff]
        %v222 = vcombine.high %v220, %v220
        %v224 = vunpack.c.l.s4 1983009808
        %v225 = vunpack.c.0.s8 %v224
        %v226 = vlaneseq
        %v227 = vshrl.u32 %v226, 7
        %v228 = vsub.s32 %v225, %v227
        %v229 = vrot.slane %v220, %v228
        %v231 = vunpack.c.l.s4 1983009808
        %v232 = vunpack.c.0.s8 %v231
        %v233 = vlaneseq
        %v234 = vshrl.u32 %v233, 7
        %v235 = vsub.s32 %v232, %v234
        %v236 = vrot.slane %v222, %v235
        %v237 = vcombine.high %v229, %v229
        %v238 = vcombine.high %v236, %v236
        %v243 = vpack.c.bf16 %v229, %v229
        %v244 = vpack.c.bf16 %v237, %v237
        %v245 = vpack.c.bf16 %v236, %v236
        %v246 = vpack.c.bf16 %v238, %v238
        %v247 = vld [vmem:[%s216] sm:$0xf]
        %v248 = vld [vmem:[%s216 + $0x4] sm:$0xf]
        %v249 = vld [vmem:[%s216 + $0x8] sm:$0xf]
        %v250 = vld [vmem:[%s216 + $0xc] sm:$0xf]
        %v251 = vld [vmem:[%s216 + $0x10] sm:$0xf]
        %v252 = vld [vmem:[%s216 + $0x14] sm:$0xf]
        %v253 = vld [vmem:[%s216 + $0x18] sm:$0xf]
        %v254 = vld [vmem:[%s216 + $0x1c] sm:$0xf]
        %v255 = vld [vmem:[%s216 + $0x20] sm:$0xf]
        %v256 = vld [vmem:[%s216 + $0x24] sm:$0xf]
        %v257 = vld [vmem:[%s216 + $0x28] sm:$0xf]
        %v258 = vld [vmem:[%s216 + $0x2c] sm:$0xf]
        %v259 = vld [vmem:[%s216 + $0x30] sm:$0xf]
        %v260 = vld [vmem:[%s216 + $0x34] sm:$0xf]
        %v261 = vld [vmem:[%s216 + $0x38] sm:$0xf]
        %v262 = vld [vmem:[%s216 + $0x3c] sm:$0xf]
        %v263 = vld [vmem:[%s216 + $0x40] sm:$0xf]
        %v264 = vld [vmem:[%s216 + $0x44] sm:$0xf]
        %v265 = vld [vmem:[%s216 + $0x48] sm:$0xf]
        %v266 = vld [vmem:[%s216 + $0x4c] sm:$0xf]
        %v267 = vld [vmem:[%s216 + $0x50] sm:$0xf]
        %v268 = vld [vmem:[%s216 + $0x54] sm:$0xf]
        %v269 = vld [vmem:[%s216 + $0x58] sm:$0xf]
        %v270 = vld [vmem:[%s216 + $0x5c] sm:$0xf]
        %v271 = vld [vmem:[%s216 + $0x60] sm:$0xf]
        %v272 = vld [vmem:[%s216 + $0x64] sm:$0xf]
        %v273 = vld [vmem:[%s216 + $0x68] sm:$0xf]
        %v274 = vld [vmem:[%s216 + $0x6c] sm:$0xf]
        %v275 = vld [vmem:[%s216 + $0x70] sm:$0xf]
        %v276 = vld [vmem:[%s216 + $0x74] sm:$0xf]
        %v277 = vld [vmem:[%s216 + $0x78] sm:$0xf]
        %v278 = vld [vmem:[%s216 + $0x7c] sm:$0xf]
        %v279 = vld [vmem:[%s216 + $0x80] sm:$0xf]
        %v280 = vld [vmem:[%s216 + $0x84] sm:$0xf]
        %v281 = vld [vmem:[%s216 + $0x88] sm:$0xf]
        %v282 = vld [vmem:[%s216 + $0x8c] sm:$0xf]
        %v283 = vld [vmem:[%s216 + $0x90] sm:$0xf]
        %v284 = vld [vmem:[%s216 + $0x94] sm:$0xf]
        %v285 = vld [vmem:[%s216 + $0x98] sm:$0xf]
        %v286 = vld [vmem:[%s216 + $0x9c] sm:$0xf]
        %v287 = vld [vmem:[%s216 + $0xa0] sm:$0xf]
        %v288 = vld [vmem:[%s216 + $0xa4] sm:$0xf]
        %v289 = vld [vmem:[%s216 + $0xa8] sm:$0xf]
        %v290 = vld [vmem:[%s216 + $0xac] sm:$0xf]
        %v291 = vld [vmem:[%s216 + $0xb0] sm:$0xf]
        %v292 = vld [vmem:[%s216 + $0xb4] sm:$0xf]
        %v293 = vld [vmem:[%s216 + $0xb8] sm:$0xf]
        %v294 = vld [vmem:[%s216 + $0xbc] sm:$0xf]
        %v295 = vld [vmem:[%s216 + $0xc0] sm:$0xf]
        %v296 = vld [vmem:[%s216 + $0xc4] sm:$0xf]
        %v297 = vld [vmem:[%s216 + $0xc8] sm:$0xf]
        %v298 = vld [vmem:[%s216 + $0xcc] sm:$0xf]
        %v299 = vld [vmem:[%s216 + $0xd0] sm:$0xf]
        %v300 = vld [vmem:[%s216 + $0xd4] sm:$0xf]
        %v301 = vld [vmem:[%s216 + $0xd8] sm:$0xf]
        %v302 = vld [vmem:[%s216 + $0xdc] sm:$0xf]
        %v303 = vld [vmem:[%s216 + $0xe0] sm:$0xf]
        %v304 = vld [vmem:[%s216 + $0xe4] sm:$0xf]
        %v305 = vld [vmem:[%s216 + $0xe8] sm:$0xf]
        %v306 = vld [vmem:[%s216 + $0xec] sm:$0xf]
        %v307 = vld [vmem:[%s216 + $0xf0] sm:$0xf]
        %v308 = vld [vmem:[%s216 + $0xf4] sm:$0xf]
        %v309 = vld [vmem:[%s216 + $0xf8] sm:$0xf]
        %v310 = vld [vmem:[%s216 + $0xfc] sm:$0xf]
        %v375 = vunpack.c.l.b16 %v247
        %v376 = vunpack.c.l.b16 %v248
        %v377 = vunpack.c.l.b16 %v249
        %v378 = vunpack.c.l.b16 %v250
        %v379 = vunpack.c.l.b16 %v251
        %v380 = vunpack.c.l.b16 %v252
        %v381 = vunpack.c.l.b16 %v253
        %v382 = vunpack.c.l.b16 %v254
        %v383 = vunpack.c.l.b16 %v255
        %v384 = vunpack.c.l.b16 %v256
        %v385 = vunpack.c.l.b16 %v257
        %v386 = vunpack.c.l.b16 %v258
        %v387 = vunpack.c.l.b16 %v259
        %v388 = vunpack.c.l.b16 %v260
        %v389 = vunpack.c.l.b16 %v261
        %v390 = vunpack.c.l.b16 %v262
        %v391 = vunpack.c.l.b16 %v263
        %v392 = vunpack.c.l.b16 %v264
        %v393 = vunpack.c.l.b16 %v265
        %v394 = vunpack.c.l.b16 %v266
        %v395 = vunpack.c.l.b16 %v267
        %v396 = vunpack.c.l.b16 %v268
        %v397 = vunpack.c.l.b16 %v269
        %v398 = vunpack.c.l.b16 %v270
        %v399 = vunpack.c.l.b16 %v271
        %v400 = vunpack.c.l.b16 %v272
        %v401 = vunpack.c.l.b16 %v273
        %v402 = vunpack.c.l.b16 %v274
        %v403 = vunpack.c.l.b16 %v275
        %v404 = vunpack.c.l.b16 %v276
        %v405 = vunpack.c.l.b16 %v277
        %v406 = vunpack.c.l.b16 %v278
        %v407 = vunpack.c.l.b16 %v279
        %v408 = vunpack.c.l.b16 %v280
        %v409 = vunpack.c.l.b16 %v281
        %v410 = vunpack.c.l.b16 %v282
        %v411 = vunpack.c.l.b16 %v283
        %v412 = vunpack.c.l.b16 %v284
        %v413 = vunpack.c.l.b16 %v285
        %v414 = vunpack.c.l.b16 %v286
        %v415 = vunpack.c.l.b16 %v287
        %v416 = vunpack.c.l.b16 %v288
        %v417 = vunpack.c.l.b16 %v289
        %v418 = vunpack.c.l.b16 %v290
        %v419 = vunpack.c.l.b16 %v291
        %v420 = vunpack.c.l.b16 %v292
        %v421 = vunpack.c.l.b16 %v293
        %v422 = vunpack.c.l.b16 %v294
        %v423 = vunpack.c.l.b16 %v295
        %v424 = vunpack.c.l.b16 %v296
        %v425 = vunpack.c.l.b16 %v297
        %v426 = vunpack.c.l.b16 %v298
        %v427 = vunpack.c.l.b16 %v299
        %v428 = vunpack.c.l.b16 %v300
        %v429 = vunpack.c.l.b16 %v301
        %v430 = vunpack.c.l.b16 %v302
        %v431 = vunpack.c.l.b16 %v303
        %v432 = vunpack.c.l.b16 %v304
        %v433 = vunpack.c.l.b16 %v305
        %v434 = vunpack.c.l.b16 %v306
        %v435 = vunpack.c.l.b16 %v307
        %v436 = vunpack.c.l.b16 %v308
        %v437 = vunpack.c.l.b16 %v309
        %v438 = vunpack.c.l.b16 %v310
        %v439 = vpack.c.b16 %v376, %v375
        %v440 = vpack.c.b16 %v378, %v377
        %v441 = vpack.c.b16 %v380, %v379
        %v442 = vpack.c.b16 %v382, %v381
        %v443 = vpack.c.b16 %v384, %v383
        %v444 = vpack.c.b16 %v386, %v385
        %v445 = vpack.c.b16 %v388, %v387
        %v446 = vpack.c.b16 %v390, %v389
        %v447 = vpack.c.b16 %v392, %v391
        %v448 = vpack.c.b16 %v394, %v393
        %v449 = vpack.c.b16 %v396, %v395
        %v450 = vpack.c.b16 %v398, %v397
        %v451 = vpack.c.b16 %v400, %v399
        %v452 = vpack.c.b16 %v402, %v401
        %v453 = vpack.c.b16 %v404, %v403
        %v454 = vpack.c.b16 %v406, %v405
        %v455 = vpack.c.b16 %v408, %v407
        %v456 = vpack.c.b16 %v410, %v409
        %v457 = vpack.c.b16 %v412, %v411
        %v458 = vpack.c.b16 %v414, %v413
        %v459 = vpack.c.b16 %v416, %v415
        %v460 = vpack.c.b16 %v418, %v417
        %v461 = vpack.c.b16 %v420, %v419
        %v462 = vpack.c.b16 %v422, %v421
        %v463 = vpack.c.b16 %v424, %v423
        %v464 = vpack.c.b16 %v426, %v425
        %v465 = vpack.c.b16 %v428, %v427
        %v466 = vpack.c.b16 %v430, %v429
        %v467 = vpack.c.b16 %v432, %v431
        %v468 = vpack.c.b16 %v434, %v433
        %v469 = vpack.c.b16 %v436, %v435
        %v470 = vpack.c.b16 %v438, %v437
        %503 = vmatprep.subr.bf16.mxu0 0
        %504 = vmatpush1.bf16.msra.mxu0 %v439
        %505 = vmatprep.subr.bf16.mxu0 0
        %506 = vmatpush1.bf16.msra.mxu0 %v440
        %507 = vmatprep.subr.bf16.mxu0 0
        %508 = vmatpush1.bf16.msra.mxu0 %v441
        %509 = vmatprep.subr.bf16.mxu0 0
        %510 = vmatpush1.bf16.msra.mxu0 %v442
        %511 = vmatprep.subr.bf16.mxu0 0
        %512 = vmatpush1.bf16.msra.mxu0 %v443
        %513 = vmatprep.subr.bf16.mxu0 0
        %514 = vmatpush1.bf16.msra.mxu0 %v444
        %515 = vmatprep.subr.bf16.mxu0 0
        %516 = vmatpush1.bf16.msra.mxu0 %v445
        %517 = vmatprep.subr.bf16.mxu0 0
        %518 = vmatpush1.bf16.msra.mxu0 %v446
        %519 = vmatprep.subr.bf16.mxu0 0
        %520 = vmatpush1.bf16.msra.mxu0 %v447
        %521 = vmatprep.subr.bf16.mxu0 0
        %522 = vmatpush1.bf16.msra.mxu0 %v448
        %523 = vmatprep.subr.bf16.mxu0 0
        %524 = vmatpush1.bf16.msra.mxu0 %v449
        %525 = vmatprep.subr.bf16.mxu0 0
        %526 = vmatpush1.bf16.msra.mxu0 %v450
        %527 = vmatprep.subr.bf16.mxu0 0
        %528 = vmatpush1.bf16.msra.mxu0 %v451
        %529 = vmatprep.subr.bf16.mxu0 0
        %530 = vmatpush1.bf16.msra.mxu0 %v452
        %531 = vmatprep.subr.bf16.mxu0 0
        %532 = vmatpush1.bf16.msra.mxu0 %v453
        %533 = vmatprep.subr.bf16.mxu0 0
        %534 = vmatpush1.bf16.msra.mxu0 %v454
        %535 = vmatprep.mubr.bf16.mxu0 %v244
        %536 = vmatmul.mubr.bf16.gmra.mrb[0].mxu0 %v243
        %v537 = vpop.f32.mrb[0].mxu0
        %v538 = vadd.f32 0.0, %v537
        %v539 = vpop.f32.mrb[0].mxu0
        %v540 = vpop.f32.mrb[0].mxu0
        %v541 = vpop.f32.mrb[0].mxu0
        %542 = vdwg.mxu0
        %543 = vmatprep.subr.bf16.mxu0 0
        %544 = vmatpush1.bf16.msra.mxu0 %v455
        %545 = vmatprep.subr.bf16.mxu0 0
        %546 = vmatpush1.bf16.msra.mxu0 %v456
        %547 = vmatprep.subr.bf16.mxu0 0
        %548 = vmatpush1.bf16.msra.mxu0 %v457
        %549 = vmatprep.subr.bf16.mxu0 0
        %550 = vmatpush1.bf16.msra.mxu0 %v458
        %551 = vmatprep.subr.bf16.mxu0 0
        %552 = vmatpush1.bf16.msra.mxu0 %v459
        %553 = vmatprep.subr.bf16.mxu0 0
        %554 = vmatpush1.bf16.msra.mxu0 %v460
        %555 = vmatprep.subr.bf16.mxu0 0
        %556 = vmatpush1.bf16.msra.mxu0 %v461
        %557 = vmatprep.subr.bf16.mxu0 0
        %558 = vmatpush1.bf16.msra.mxu0 %v462
        %559 = vmatprep.subr.bf16.mxu0 0
        %560 = vmatpush1.bf16.msra.mxu0 %v463
        %561 = vmatprep.subr.bf16.mxu0 0
        %562 = vmatpush1.bf16.msra.mxu0 %v464
        %563 = vmatprep.subr.bf16.mxu0 0
        %564 = vmatpush1.bf16.msra.mxu0 %v465
        %565 = vmatprep.subr.bf16.mxu0 0
        %566 = vmatpush1.bf16.msra.mxu0 %v466
        %567 = vmatprep.subr.bf16.mxu0 0
        %568 = vmatpush1.bf16.msra.mxu0 %v467
        %569 = vmatprep.subr.bf16.mxu0 0
        %570 = vmatpush1.bf16.msra.mxu0 %v468
        %571 = vmatprep.subr.bf16.mxu0 0
        %572 = vmatpush1.bf16.msra.mxu0 %v469
        %573 = vmatprep.subr.bf16.mxu0 0
        %574 = vmatpush1.bf16.msra.mxu0 %v470
        %575 = vmatprep.mubr.bf16.mxu0 %v246
        %576 = vmatmul.mubr.bf16.gmra.mrb[0].mxu0 %v245
        %v577 = vpop.f32.mrb[0].mxu0
        %v578 = vadd.f32 %v538, %v577
        %v579 = vpop.f32.mrb[0].mxu0
        %v580 = vpop.f32.mrb[0].mxu0
        %v581 = vpop.f32.mrb[0].mxu0
        %582 = vdwg.mxu0
        %p583 = scmp.eq.s32.totalorder %s22, 0
        // Predicated region
        $region33: #{tpu_custom_call.1} parent=31 // pred_check
          %p584 = pneg %p583
        $region34: #{tpu_custom_call.1} parent=31 // pred_check_branch
          %586 = sbr.rel (%p584) target = $region36
        $region35: #{tpu_custom_call.1} parent=31 // pred_region
          %vm587 = vcmask 123904
          %588 = vst.msk [vmem:[%s202] sm:$0x3] %vm587, %v578
        $region36: #{tpu_custom_call.1} parent=31 // pred_fallthru
          _
        %p589 = scmp.gt.s32.totalorder %s22, 0
        // Predicated region
        $region37: #{tpu_custom_call.1} parent=31 // pred_check
          %p590 = pneg %p589
        $region38: #{tpu_custom_call.1} parent=31 // pred_check_branch
          %592 = sbr.rel (%p590) target = $region40
        $region39: #{tpu_custom_call.1} parent=31 // pred_region
          %v593 = vld [vmem:[%s202] sm:$0x3]
          %v594 = vadd.f32 %v593, %v578
          %vm595 = vcmask 123904
          %596 = vst.msk [vmem:[%s202] sm:$0x3] %vm595, %v594
        $region40: #{tpu_custom_call.1} parent=31 // pred_fallthru
          _
        %p597 = scmp.eq.s32.totalorder %s21, 0
        %p598 = pnand %p583, %p597
        %p599 = pneg %p598
        // Predicated region
        $region41: #{tpu_custom_call.1} parent=31 // pred_check
          _
        $region42: #{tpu_custom_call.1} parent=31 // pred_check_branch
          %601 = sbr.rel (%p598) target = $region44
        $region43: #{tpu_custom_call.1} parent=31 // pred_region
          %v602 = vld [vmem:[%s202] sm:$0x3]
          %v603 = vld [vmem:[%s2] sm:$0x1]
          %v605 = vlaneseq
          %v606 = vshrl.u32 %v605, 7
          %v607 = vsub.s32 0, %v606
          %v608 = vrot.slane %v603, %v607
          %v610 = vadd.f32 %v602, %v608
          %vm611 = vcmask 123904
          %612 = vst.msk [vmem:[%s202] sm:$0x3] %vm611, %v610
        $region44: #{tpu_custom_call.1} parent=31 // pred_fallthru
          _
        %s613 = sand.u32 %s114, 1
        %s614 = scalar_lea.sflag [#allocation3], %s613
        %s615 = sand.u32 %s114, 1
        %s616 = smul.addr %s615, 2
        %s617 = scalar_lea.vmem [#allocation2], %s616
        // Predicated region
        $region45: #{tpu_custom_call.1} parent=31 // pred_check
          %p618 = pneg %p124
        $region46: #{tpu_custom_call.1} parent=31 // pred_check_branch
          %620 = sbr.rel (%p618) target = $region48
        $region47: #{tpu_custom_call.1} parent=31 // pred_region
          %s622 = ssub.s32 32, 32
          %623 = vsyncadd %s614, %s622
          %s624 = smul.addr %s21, 32
          %s625 = scalar_lea.hbm %s3, %s624
          %s627 = sshll.u32 %s617, 4
          %s628 = int_to_ptr.vmem [resolvable:$true] %s627
          %630 = dma.vmem_to_hbm [thread:$0]  %s628, 32, %s625, %s614
        $region48: #{tpu_custom_call.1} parent=31 // pred_fallthru
          _
      $region32: #{tpu_custom_call.1} parent=5 // pred_fallthru
        _
      %p631 = scmp.le.s32.totalorder 2, %s12
      // Predicated region
      $region49: #{tpu_custom_call.1} parent=5 // pred_check
        %p632 = pneg %p631
      $region50: #{tpu_custom_call.1} parent=5 // pred_check_branch
        %634 = sbr.rel (%p632) target = $region52
      $region51: #{tpu_custom_call.1} parent=5 // pred_region
        %s635 = ssub.s32 %s12, 2
        // Predicated region
        $region53: #{tpu_custom_call.1} parent=51 // pred_check
          %p636 = pneg %p130
        $region54: #{tpu_custom_call.1} parent=51 // pred_check_branch
          %638 = sbr.rel (%p636) target = $region56
        $region55: #{tpu_custom_call.1} parent=51 // pred_region
          %s639 = sand.u32 %s115, 1
          %s640 = scalar_lea.sflag [#allocation3], %s639
          %s641 = sand.u32 %s115, 1
          %s642 = smul.addr %s641, 2
          %s643 = scalar_lea.vmem [#allocation2], %s642
          %644 = dma.done %s640, 32
        $region56: #{tpu_custom_call.1} parent=51 // pred_fallthru
          _
      $region52: #{tpu_custom_call.1} parent=5 // pred_fallthru
        _
    $region6: #{tpu_custom_call.1} parent=1 // loop_footer
      %s16 = sadd.s32 1, %s12
    $region7: #{tpu_custom_call.1} parent=1 // loop_footer_branch
      %11 = sbr.rel target = $region3
    $region8: #{tpu_custom_call.1} parent=1 // loop_exit
      _
    %645 = vsyncpa [#allocation3], 1
    %s646 = scalar_lea.sflag [#allocation3], 1
    %647 = vsyncpa %s646, 1

</llo_original>
